<compile_context>
chip_gen: v5e
topology: v5e:2x2
jax: 0.10.0
libtpu: 0.0.40
codegen_flags: <defaults>
</compile_context>

<pallas_src>
import functools

import jax
import jax.numpy as jnp
import numpy as np
from jax.experimental import pallas as pl
from jax.experimental.pallas import tpu as pltpu

INPUT_KEY = "video"
RECON_KEY = "reconstructions"
MASK_KEY = "loss_mask"
_VALID_LOSS_NAMES = ["color", "perceptual", "flow", "kl", "video_consistency"]

_MiB = 1 << 20
_LANE_WIDTHS = (4096, 2048, 1024, 512, 256, 128)
_JNP_FASTPATH_ELEMS = 16 * 1024   # below this, plain jnp beats a kernel launch


# ----------------------------------------------------------------------------
# Generation-dependent VMEM budget
# ----------------------------------------------------------------------------
@functools.lru_cache(maxsize=None)
def _vmem_budget():
    """(tile_bytes per input buffer, vmem_limit_bytes) for this TPU generation."""
    try:
        cap = int(pltpu.get_tpu_info().vmem_capacity_bytes)
    except Exception:
        cap = 64 * _MiB  # be conservative (v7x-sized VMEM) if the query fails
    if cap >= 100 * _MiB:            # v5e / v6e: 128 MiB per TensorCore
        return 12 * _MiB, 64 * _MiB  # 2 inputs x 2 bufs x 12 MiB = 48 MiB
    return 8 * _MiB, 40 * _MiB       # v7x: 64 MiB per TC -> 2x2x8 = 32 MiB


# ----------------------------------------------------------------------------
# Tiling plan: lane-dense (rows, lane) slabs, padded to whole full-size blocks
# ----------------------------------------------------------------------------
def _plan_tiles(n, itemsize, tile_bytes):
    """Pick (lane, padded_rows, block_rows, grid) for a flat length-n array."""
    lane = 128
    for cand in _LANE_WIDTHS:
        if n >= 8 * cand:
            lane = cand
            break
    rows = -(-n // lane)
    rows = -(-rows // 8) * 8                                   # sublane multiple
    budget_rows = max(8, (tile_bytes // (lane * itemsize)) // 8 * 8)
    br = min(rows, budget_rows)
    rows = -(-rows // br) * br                                 # whole blocks only
    return lane, rows, br, rows // br


def _pad_flat(x, padded_n):
    flat = x.reshape(-1)
    n = flat.size
    if padded_n > n:
        flat = jnp.pad(flat, (0, padded_n - n))                # zeros: sum-neutral
    return flat


# ----------------------------------------------------------------------------
# Kernel 1: FUSED |x - r| + per-block partial sum (loss map never hits HBM)
#   input block  : (block_rows, lane)  -> 2 reads only
#   output block : (1, 8, lane)        -> lane-dense vector partial (VPU adds)
# ----------------------------------------------------------------------------
def _abs_diff_partial_kernel(x_ref, r_ref, p_ref):
    v = jnp.abs(x_ref[...].astype(jnp.float32) - r_ref[...].astype(jnp.float32))
    br, lane = v.shape
    p_ref[...] = v.reshape(br // 8, 8, lane).sum(axis=0)[None]


# Kernel 2: generic partial sum (ReduceMode.MEAN over a full per-element map)
def _partial_sum_kernel(x_ref, p_ref):
    v = x_ref[...].astype(jnp.float32)
    br, lane = v.shape
    p_ref[...] = v.reshape(br // 8, 8, lane).sum(axis=0)[None]


def _compiler_params(vmem_limit):
    return pltpu.CompilerParams(
        dimension_semantics=("parallel",),
        vmem_limit_bytes=vmem_limit,
    )


def color_loss_mean_pallas(x, recon, weight=1.0):
    """weight * mean(|x - recon|), fused single pass (mask == 1 elided)."""
    n = int(x.size)
    if n < _JNP_FASTPATH_ELEMS:
        mean = jnp.mean(jnp.abs(x.astype(jnp.float32) - recon.astype(jnp.float32)))
        return mean if weight == 1.0 else jnp.float32(weight) * mean

    tile_bytes, vmem_limit = _vmem_budget()
    itemsize = max(x.dtype.itemsize, recon.dtype.itemsize)
    lane, rows, br, grid = _plan_tiles(n, itemsize, tile_bytes)
    padded_n = rows * lane
    x2 = _pad_flat(x, padded_n).reshape(rows, lane)
    r2 = _pad_flat(recon, padded_n).reshape(rows, lane)

    cost = pl.CostEstimate(
        flops=3 * padded_n,
        transcendentals=0,
        bytes_accessed=padded_n * (x2.dtype.itemsize + r2.dtype.itemsize)
        + grid * 8 * lane * 4,
    )
    partials = pl.pallas_call(
        _abs_diff_partial_kernel,
        out_shape=jax.ShapeDtypeStruct((grid, 8, lane), jnp.float32),
        grid_spec=pltpu.PrefetchScalarGridSpec(
            num_scalar_prefetch=0,
            grid=(grid,),
            in_specs=[
                pl.BlockSpec((br, lane), lambda i: (i, 0)),
                pl.BlockSpec((br, lane), lambda i: (i, 0)),
            ],
            out_specs=pl.BlockSpec((1, 8, lane), lambda i: (i, 0, 0)),
        ),
        compiler_params=_compiler_params(vmem_limit),
        cost_estimate=cost,
    )(x2, r2)
    mean = jnp.sum(partials) / jnp.float32(n)   # divide by the TRUE count
    return mean if weight == 1.0 else jnp.float32(weight) * mean


def mean_pallas(x):
    """Mean over all elements (ReduceMode.MEAN) via lane-dense partial sums."""
    n = int(x.size)
    if n < _JNP_FASTPATH_ELEMS:
        return jnp.mean(x.astype(jnp.float32))

    tile_bytes, vmem_limit = _vmem_budget()
    lane, rows, br, grid = _plan_tiles(n, x.dtype.itemsize, tile_bytes)
    padded_n = rows * lane
    x2 = _pad_flat(x, padded_n).reshape(rows, lane)

    cost = pl.CostEstimate(
        flops=padded_n,
        transcendentals=0,
        bytes_accessed=padded_n * x2.dtype.itemsize + grid * 8 * lane * 4,
    )
    partials = pl.pallas_call(
        _partial_sum_kernel,
        out_shape=jax.ShapeDtypeStruct((grid, 8, lane), jnp.float32),
        grid_spec=pltpu.PrefetchScalarGridSpec(
            num_scalar_prefetch=0,
            grid=(grid,),
            in_specs=[pl.BlockSpec((br, lane), lambda i: (i, 0))],
            out_specs=pl.BlockSpec((1, 8, lane), lambda i: (i, 0, 0)),
        ),
        compiler_params=_compiler_params(vmem_limit),
        cost_estimate=cost,
    )(x2)
    return jnp.sum(partials) / jnp.float32(n)


# ----------------------------------------------------------------------------
# Loss modules (glue around the kernels)
# ----------------------------------------------------------------------------
class NullLoss:
    """Faithful port of the spec module: forward returns an empty dict."""

    def __call__(self, inputs, output_batch, iteration):
        return dict()

    forward = __call__


class ColorLoss:
    """Weighted masked L1 loss.  The mask is identically 1.0 (set by
    TokenizerLoss), so it is elided; |x - r| and the mean are fused."""

    def __init__(self, weight=1.0):
        self.weight = float(weight)

    def __call__(self, inputs, output_batch, iteration):
        mean = color_loss_mean_pallas(
            inputs[INPUT_KEY], output_batch[RECON_KEY], weight=self.weight
        )
        return dict(color=mean)   # already reduced (0-d)


class TokenizerLoss:
    """JAX/Pallas port of TokenizerLoss.forward (reduce mode: MEAN)."""

    def __init__(self, color_weight=1.0):
        self.reduce = mean_pallas  # ReduceMode.MEAN
        self.loss_modules = {}
        for key in _VALID_LOSS_NAMES:
            self.loss_modules[key] = NullLoss()
        self.loss_modules["color"] = ColorLoss(color_weight)

    def _reduce_once(self, curr_loss):
        # Reduce each map exactly once; 0-d values are already reduced.
        return {k: (v if v.ndim == 0 else self.reduce(v)) for k, v in curr_loss.items()}

    def forward(self, inputs, output_batch, iteration):
        loss = dict()
        total_loss = jnp.float32(0.0)
        # API fidelity: the PyTorch forward sets inputs[MASK_KEY] = ones_like(video).
        # No kernel reads it (mask == 1 is an identity), so store a scalar
        # sentinel instead of materializing a full-size tensor in HBM.
        inputs[MASK_KEY] = jnp.float32(1.0)
        reduced = dict()
        for key, module in self.loss_modules.items():
            curr_loss = module(inputs, output_batch, iteration)
            reduced = self._reduce_once(curr_loss)   # one reduction per map, reused
            loss.update(reduced)
            total_loss = total_loss + sum(reduced.values(), jnp.float32(0.0))
        # Faithful reproduction of the post-loop double update of the LAST
        # module's curr_loss (video_consistency -> NullLoss -> {} -> no-op).
        loss.update(reduced)
        total_loss = total_loss + sum(reduced.values(), jnp.float32(0.0))
        return dict(loss=loss), total_loss


# ----------------------------------------------------------------------------
if __name__ == "__main__":
    key = jax.random.PRNGKey(0)
    k1, k2, k3, k4, k5 = jax.random.split(key, 5)

    # --- tiny NCHW shape consistent with the module (jnp fast path) ---------
    B, C, H, W = 2, 4, 16, 16
    video_s = jax.random.normal(k1, (B, C, H, W), dtype=jnp.float32)
    recon_s = jax.random.normal(k2, (B, C, H, W), dtype=jnp.float32)
    module = TokenizerLoss(color_weight=1.0)
    out_dict, total_loss = module.forward(
        {INPUT_KEY: video_s}, {RECON_KEY: recon_s}, iteration=0
    )
    total_loss = jax.block_until_ready(total_loss)
    color_mean = jax.block_until_ready(out_dict["loss"]["color"])
    ref_mean = jnp.mean(jnp.abs(video_s - recon_s))
    np.testing.assert_allclose(np.asarray(color_mean), np.asarray(ref_mean),
                               rtol=1e-5, atol=1e-6)
    np.testing.assert_allclose(np.asarray(total_loss), np.asarray(ref_mean),
                               rtol=1e-5, atol=1e-6)

    # --- moderate NCTHW video shape exercising the fused Pallas kernel ------
    video = jax.random.normal(k3, (1, 3, 8, 64, 64), dtype=jnp.float32)
    recon = jax.random.normal(k4, (1, 3, 8, 64, 64), dtype=jnp.float32)
    got = jax.block_until_ready(color_loss_mean_pallas(video, recon, weight=2.0))
    ref = 2.0 * jnp.mean(jnp.abs(video - recon))
    np.testing.assert_allclose(np.asarray(got), np.asarray(ref),
                               rtol=1e-5, atol=1e-6)

    # --- awkward (non-multiple-of-1024) shape exercising the padding path ---
    z = jax.random.normal(k5, (2, 3, 40, 100), dtype=jnp.float32)  # 24000 elems
    got_m = jax.block_until_ready(mean_pallas(z))
    np.testing.assert_allclose(np.asarray(got_m), np.asarray(jnp.mean(z)),
                               rtol=1e-5, atol=1e-6)

    # --- NullLoss (the actual spec module) returns an empty dict -------------
    assert NullLoss()({INPUT_KEY: video_s}, {RECON_KEY: recon_s}, 0) == {}

    print("KERNEL_OK")
</pallas_src>

<mosaic_0001>
module attributes {stable_mosaic.version = 11 : i64} {
  func.func @_abs_diff_partial_kernel(%arg0: i32, %arg1: memref<24x4096xf32, #tpu.memory_space<vmem>>, %arg2: memref<24x4096xf32, #tpu.memory_space<vmem>>, %arg3: memref<1x8x4096xf32, #tpu.memory_space<vmem>>) attributes {dimension_semantics = [#tpu.dimension_semantics<parallel>], iteration_bounds = array<i64: 1>, scalar_prefetch = 0 : i64, scratch_operands = 0 : i64, tpu.core_type = #tpu.core_type<tc>, window_params = [{transform_indices = @transform_0, window_bounds = array<i64: 24, 4096>}, {transform_indices = @transform_1, window_bounds = array<i64: 24, 4096>}, {transform_indices = @transform_2, window_bounds = array<i64: 1, 8, 4096>}]} {
    %c0 = arith.constant 0 : index
    %c0_0 = arith.constant 0 : index
    %0 = vector.load %arg1[%c0, %c0_0] : memref<24x4096xf32, #tpu.memory_space<vmem>>, vector<24x4096xf32>
    %c0_1 = arith.constant 0 : index
    %c0_2 = arith.constant 0 : index
    %1 = vector.load %arg2[%c0_1, %c0_2] : memref<24x4096xf32, #tpu.memory_space<vmem>>, vector<24x4096xf32>
    %2 = arith.subf %0, %1 : vector<24x4096xf32>
    %3 = math.absf %2 : vector<24x4096xf32>
    %4 = vector.shape_cast %3 : vector<24x4096xf32> to vector<3x8x4096xf32>
    %cst = arith.constant dense<0.000000e+00> : vector<8x4096xf32>
    %5 = vector.multi_reduction <add>, %4, %cst [0] : vector<3x8x4096xf32> to vector<8x4096xf32>
    %6 = vector.shape_cast %5 : vector<8x4096xf32> to vector<1x8x4096xf32>
    %c0_3 = arith.constant 0 : index
    %c0_4 = arith.constant 0 : index
    %c0_5 = arith.constant 0 : index
    %7 = vector.load %arg3[%c0_3, %c0_4, %c0_5] : memref<1x8x4096xf32, #tpu.memory_space<vmem>>, vector<1x8x4096xf32>
    tpu.vector_store %arg3[%c0_3, %c0_4, %c0_5], %6 {strides = array<i32>} : memref<1x8x4096xf32, #tpu.memory_space<vmem>>, vector<1x8x4096xf32>,
    return
  }
  func.func @transform_0(%arg0: i32) -> (i32, i32) {
    %c0_i32 = arith.constant 0 : i32
    %c0_i32_0 = arith.constant 0 : i32
    return %arg0, %c0_i32 : i32, i32
  }
  func.func @transform_1(%arg0: i32) -> (i32, i32) {
    %c0_i32 = arith.constant 0 : i32
    %c0_i32_0 = arith.constant 0 : i32
    return %arg0, %c0_i32 : i32, i32
  }
  func.func @transform_2(%arg0: i32) -> (i32, i32, i32) {
    %c0_i32 = arith.constant 0 : i32
    %c0_i32_0 = arith.constant 0 : i32
    %c0_i32_1 = arith.constant 0 : i32
    return %arg0, %c0_i32, %c0_i32_0 : i32, i32, i32
  }
}

</mosaic_0001>

<llo_original>
// kernel: tpu_custom_call.1
$region0: #{tpu_custom_call.1}
  #allocation0 [shape = 'u32[]', space=smem, size = 0x4, offset = 0x4, fixed_abs, tag = 'smem constant byte address 0x4 - core index']
  #allocation1 [shape = 'u32[72,128]{1,0:T(1,128)}', space=vmem, size = 0x9000, scoped, tag = 'internal scratch']
  %s0 = inlined_call_operand.hbm [shape: f32[24,4096], index: 0, kind: input, shape index: {}]
  %s1 = inlined_call_operand.hbm [shape: f32[24,4096], index: 1, kind: input, shape index: {}]
  %s2 = inlined_call_operand.hbm [shape: f32[1,8,4096], index: 2, kind: output, shape index: {}]
  %s3 = sld [smem:[#allocation0]]
  $region26: #{tpu_custom_call.1} parent=0
    _
  %s5 = ssub.s32 1, %s3
  %s6 = scalar_select 0, %s5, %s3
  $region1: #{tpu_custom_call.1} parent=0
    #allocation2 [shape = 'u8[393216]{0}', space=vmem, size = 0x60000, scoped, tag = 'input window, operand 0, single buffered']
    #allocation3 [shape = 's32[1]{0}', space=sflag, size = 0x4, scoped, tag = 'scoped memory for tpu_custom_call.1']
    #allocation4 [shape = 's32[1]{0}', space=sflag, size = 0x4, scoped, tag = 'scoped memory for tpu_custom_call.1']
    #allocation5 [shape = 'u8[393216]{0}', space=vmem, size = 0x60000, scoped, tag = 'input window, operand 1, single buffered']
    #allocation6 [shape = 's32[1]{0}', space=sflag, size = 0x4, scoped, tag = 'scoped memory for tpu_custom_call.1']
    #allocation7 [shape = 'u8[131072]{0}', space=vmem, size = 0x20000, scoped, tag = 'output window, operand 0, single buffered']
    %7 = vsyncpa [#allocation3], 0
    %8 = vsyncpa [#allocation6], 0
    %9 = vsyncpa [#allocation4], 0
    // Predicated region
    $region2: #{tpu_custom_call.1} parent=1 // pred_check
      _
    $region3: #{tpu_custom_call.1} parent=1 // pred_check_branch
      %11 = sbr.rel (0) target = $region5
    $region4: #{tpu_custom_call.1} parent=1 // pred_region
      %13 = vsyncadd [#allocation3], 0
      %s14 = sshll.u32 %s0, 4
      %s15 = int_to_ptr.hbm [resolvable:$true] %s14
      %s16 = sshll.u32 [#allocation2], 4
      %s17 = int_to_ptr.vmem [resolvable:$true] %s16
      %22 = dma.hbm_to_vmem [thread:$0]  %s15, 12288, %s17, [#allocation3], 4096, 4096, 256
    $region5: #{tpu_custom_call.1} parent=1 // pred_fallthru
      _
    // Predicated region
    $region6: #{tpu_custom_call.1} parent=1 // pred_check
      _
    $region7: #{tpu_custom_call.1} parent=1 // pred_check_branch
      %24 = sbr.rel (0) target = $region9
    $region8: #{tpu_custom_call.1} parent=1 // pred_region
      %26 = vsyncadd [#allocation6], 0
      %s27 = sshll.u32 %s1, 4
      %s28 = int_to_ptr.hbm [resolvable:$true] %s27
      %s29 = sshll.u32 [#allocation5], 4
      %s30 = int_to_ptr.vmem [resolvable:$true] %s29
      %35 = dma.hbm_to_vmem [thread:$0]  %s28, 12288, %s30, [#allocation6], 4096, 4096, 256
    $region9: #{tpu_custom_call.1} parent=1 // pred_fallthru
      _
    // Predicated region
    $region10: #{tpu_custom_call.1} parent=1 // pred_check
      _
    $region11: #{tpu_custom_call.1} parent=1 // pred_check_branch
      %37 = sbr.rel (0) target = $region13
    $region12: #{tpu_custom_call.1} parent=1 // pred_region
      %39 = dma.done [#allocation3], 12288
    $region13: #{tpu_custom_call.1} parent=1 // pred_fallthru
      _
    // Predicated region
    $region14: #{tpu_custom_call.1} parent=1 // pred_check
      _
    $region15: #{tpu_custom_call.1} parent=1 // pred_check_branch
      %41 = sbr.rel (0) target = $region17
    $region16: #{tpu_custom_call.1} parent=1 // pred_region
      %43 = dma.done [#allocation6], 12288
    $region17: #{tpu_custom_call.1} parent=1 // pred_fallthru
      _
    %v44 = vld [vmem:[#allocation2] sm:$0xff]
    %v45 = vld [vmem:[#allocation2 + $0x8] sm:$0xff]
    %v46 = vld [vmem:[#allocation2 + $0x10] sm:$0xff]
    %v47 = vld [vmem:[#allocation2 + $0x18] sm:$0xff]
    %v48 = vld [vmem:[#allocation2 + $0x20] sm:$0xff]
    %v49 = vld [vmem:[#allocation2 + $0x28] sm:$0xff]
    %v50 = vld [vmem:[#allocation2 + $0x30] sm:$0xff]
    %v51 = vld [vmem:[#allocation2 + $0x38] sm:$0xff]
    %v52 = vld [vmem:[#allocation2 + $0x40] sm:$0xff]
    %v53 = vld [vmem:[#allocation2 + $0x48] sm:$0xff]
    %v54 = vld [vmem:[#allocation2 + $0x50] sm:$0xff]
    %v55 = vld [vmem:[#allocation2 + $0x58] sm:$0xff]
    %v56 = vld [vmem:[#allocation2 + $0x60] sm:$0xff]
    %v57 = vld [vmem:[#allocation2 + $0x68] sm:$0xff]
    %v58 = vld [vmem:[#allocation2 + $0x70] sm:$0xff]
    %v59 = vld [vmem:[#allocation2 + $0x78] sm:$0xff]
    %v60 = vld [vmem:[#allocation2 + $0x80] sm:$0xff]
    %v61 = vld [vmem:[#allocation2 + $0x88] sm:$0xff]
    %v62 = vld [vmem:[#allocation2 + $0x90] sm:$0xff]
    %v63 = vld [vmem:[#allocation2 + $0x98] sm:$0xff]
    %v64 = vld [vmem:[#allocation2 + $0xa0] sm:$0xff]
    %v65 = vld [vmem:[#allocation2 + $0xa8] sm:$0xff]
    %v66 = vld [vmem:[#allocation2 + $0xb0] sm:$0xff]
    %v67 = vld [vmem:[#allocation2 + $0xb8] sm:$0xff]
    %v68 = vld [vmem:[#allocation2 + $0xc0] sm:$0xff]
    %v69 = vld [vmem:[#allocation2 + $0xc8] sm:$0xff]
    %v70 = vld [vmem:[#allocation2 + $0xd0] sm:$0xff]
    %v71 = vld [vmem:[#allocation2 + $0xd8] sm:$0xff]
    %v72 = vld [vmem:[#allocation2 + $0xe0] sm:$0xff]
    %v73 = vld [vmem:[#allocation2 + $0xe8] sm:$0xff]
    %v74 = vld [vmem:[#allocation2 + $0xf0] sm:$0xff]
    %v75 = vld [vmem:[#allocation2 + $0xf8] sm:$0xff]
    %v76 = vld [vmem:[#allocation2 + $0x100] sm:$0xff]
    %v77 = vld [vmem:[#allocation2 + $0x108] sm:$0xff]
    %v78 = vld [vmem:[#allocation2 + $0x110] sm:$0xff]
    %v79 = vld [vmem:[#allocation2 + $0x118] sm:$0xff]
    %v80 = vld [vmem:[#allocation2 + $0x120] sm:$0xff]
    %v81 = vld [vmem:[#allocation2 + $0x128] sm:$0xff]
    %v82 = vld [vmem:[#allocation2 + $0x130] sm:$0xff]
    %v83 = vld [vmem:[#allocation2 + $0x138] sm:$0xff]
    %v84 = vld [vmem:[#allocation2 + $0x140] sm:$0xff]
    %v85 = vld [vmem:[#allocation2 + $0x148] sm:$0xff]
    %v86 = vld [vmem:[#allocation2 + $0x150] sm:$0xff]
    %v87 = vld [vmem:[#allocation2 + $0x158] sm:$0xff]
    %v88 = vld [vmem:[#allocation2 + $0x160] sm:$0xff]
    %v89 = vld [vmem:[#allocation2 + $0x168] sm:$0xff]
    %v90 = vld [vmem:[#allocation2 + $0x170] sm:$0xff]
    %v91 = vld [vmem:[#allocation2 + $0x178] sm:$0xff]
    %v92 = vld [vmem:[#allocation2 + $0x180] sm:$0xff]
    %v93 = vld [vmem:[#allocation2 + $0x188] sm:$0xff]
    %v94 = vld [vmem:[#allocation2 + $0x190] sm:$0xff]
    %v95 = vld [vmem:[#allocation2 + $0x198] sm:$0xff]
    %v96 = vld [vmem:[#allocation2 + $0x1a0] sm:$0xff]
    %v97 = vld [vmem:[#allocation2 + $0x1a8] sm:$0xff]
    %v98 = vld [vmem:[#allocation2 + $0x1b0] sm:$0xff]
    %v99 = vld [vmem:[#allocation2 + $0x1b8] sm:$0xff]
    %v100 = vld [vmem:[#allocation2 + $0x1c0] sm:$0xff]
    %v101 = vld [vmem:[#allocation2 + $0x1c8] sm:$0xff]
    %v102 = vld [vmem:[#allocation2 + $0x1d0] sm:$0xff]
    %v103 = vld [vmem:[#allocation2 + $0x1d8] sm:$0xff]
    %v104 = vld [vmem:[#allocation2 + $0x1e0] sm:$0xff]
    %v105 = vld [vmem:[#allocation2 + $0x1e8] sm:$0xff]
    %v106 = vld [vmem:[#allocation2 + $0x1f0] sm:$0xff]
    %v107 = vld [vmem:[#allocation2 + $0x1f8] sm:$0xff]
    %v108 = vld [vmem:[#allocation2 + $0x200] sm:$0xff]
    %v109 = vld [vmem:[#allocation2 + $0x208] sm:$0xff]
    %v110 = vld [vmem:[#allocation2 + $0x210] sm:$0xff]
    %v111 = vld [vmem:[#allocation2 + $0x218] sm:$0xff]
    %v112 = vld [vmem:[#allocation2 + $0x220] sm:$0xff]
    %v113 = vld [vmem:[#allocation2 + $0x228] sm:$0xff]
    %v114 = vld [vmem:[#allocation2 + $0x230] sm:$0xff]
    %v115 = vld [vmem:[#allocation2 + $0x238] sm:$0xff]
    %v116 = vld [vmem:[#allocation2 + $0x240] sm:$0xff]
    %v117 = vld [vmem:[#allocation2 + $0x248] sm:$0xff]
    %v118 = vld [vmem:[#allocation2 + $0x250] sm:$0xff]
    %v119 = vld [vmem:[#allocation2 + $0x258] sm:$0xff]
    %v120 = vld [vmem:[#allocation2 + $0x260] sm:$0xff]
    %v121 = vld [vmem:[#allocation2 + $0x268] sm:$0xff]
    %v122 = vld [vmem:[#allocation2 + $0x270] sm:$0xff]
    %v123 = vld [vmem:[#allocation2 + $0x278] sm:$0xff]
    %v124 = vld [vmem:[#allocation2 + $0x280] sm:$0xff]
    %v125 = vld [vmem:[#allocation2 + $0x288] sm:$0xff]
    %v126 = vld [vmem:[#allocation2 + $0x290] sm:$0xff]
    %v127 = vld [vmem:[#allocation2 + $0x298] sm:$0xff]
    %v128 = vld [vmem:[#allocation2 + $0x2a0] sm:$0xff]
    %v129 = vld [vmem:[#allocation2 + $0x2a8] sm:$0xff]
    %v130 = vld [vmem:[#allocation2 + $0x2b0] sm:$0xff]
    %v131 = vld [vmem:[#allocation2 + $0x2b8] sm:$0xff]
    %v132 = vld [vmem:[#allocation2 + $0x2c0] sm:$0xff]
    %v133 = vld [vmem:[#allocation2 + $0x2c8] sm:$0xff]
    %v134 = vld [vmem:[#allocation2 + $0x2d0] sm:$0xff]
    %v135 = vld [vmem:[#allocation2 + $0x2d8] sm:$0xff]
    %v136 = vld [vmem:[#allocation2 + $0x2e0] sm:$0xff]
    %v137 = vld [vmem:[#allocation2 + $0x2e8] sm:$0xff]
    %v138 = vld [vmem:[#allocation2 + $0x2f0] sm:$0xff]
    %v139 = vld [vmem:[#allocation2 + $0x2f8] sm:$0xff]
    %v140 = vld [vmem:[#allocation5] sm:$0xff]
    %v141 = vld [vmem:[#allocation5 + $0x8] sm:$0xff]
    %v142 = vld [vmem:[#allocation5 + $0x10] sm:$0xff]
    %v143 = vld [vmem:[#allocation5 + $0x18] sm:$0xff]
    %v144 = vld [vmem:[#allocation5 + $0x20] sm:$0xff]
    %v145 = vld [vmem:[#allocation5 + $0x28] sm:$0xff]
    %v146 = vld [vmem:[#allocation5 + $0x30] sm:$0xff]
    %v147 = vld [vmem:[#allocation5 + $0x38] sm:$0xff]
    %v148 = vld [vmem:[#allocation5 + $0x40] sm:$0xff]
    %v149 = vld [vmem:[#allocation5 + $0x48] sm:$0xff]
    %v150 = vld [vmem:[#allocation5 + $0x50] sm:$0xff]
    %v151 = vld [vmem:[#allocation5 + $0x58] sm:$0xff]
    %v152 = vld [vmem:[#allocation5 + $0x60] sm:$0xff]
    %v153 = vld [vmem:[#allocation5 + $0x68] sm:$0xff]
    %v154 = vld [vmem:[#allocation5 + $0x70] sm:$0xff]
    %v155 = vld [vmem:[#allocation5 + $0x78] sm:$0xff]
    %v156 = vld [vmem:[#allocation5 + $0x80] sm:$0xff]
    %v157 = vld [vmem:[#allocation5 + $0x88] sm:$0xff]
    %v158 = vld [vmem:[#allocation5 + $0x90] sm:$0xff]
    %v159 = vld [vmem:[#allocation5 + $0x98] sm:$0xff]
    %v160 = vld [vmem:[#allocation5 + $0xa0] sm:$0xff]
    %v161 = vld [vmem:[#allocation5 + $0xa8] sm:$0xff]
    %v162 = vld [vmem:[#allocation5 + $0xb0] sm:$0xff]
    %v163 = vld [vmem:[#allocation5 + $0xb8] sm:$0xff]
    %v164 = vld [vmem:[#allocation5 + $0xc0] sm:$0xff]
    %v165 = vld [vmem:[#allocation5 + $0xc8] sm:$0xff]
    %v166 = vld [vmem:[#allocation5 + $0xd0] sm:$0xff]
    %v167 = vld [vmem:[#allocation5 + $0xd8] sm:$0xff]
    %v168 = vld [vmem:[#allocation5 + $0xe0] sm:$0xff]
    %v169 = vld [vmem:[#allocation5 + $0xe8] sm:$0xff]
    %v170 = vld [vmem:[#allocation5 + $0xf0] sm:$0xff]
    %v171 = vld [vmem:[#allocation5 + $0xf8] sm:$0xff]
    %v172 = vld [vmem:[#allocation5 + $0x100] sm:$0xff]
    %v173 = vld [vmem:[#allocation5 + $0x108] sm:$0xff]
    %v174 = vld [vmem:[#allocation5 + $0x110] sm:$0xff]
    %v175 = vld [vmem:[#allocation5 + $0x118] sm:$0xff]
    %v176 = vld [vmem:[#allocation5 + $0x120] sm:$0xff]
    %v177 = vld [vmem:[#allocation5 + $0x128] sm:$0xff]
    %v178 = vld [vmem:[#allocation5 + $0x130] sm:$0xff]
    %v179 = vld [vmem:[#allocation5 + $0x138] sm:$0xff]
    %v180 = vld [vmem:[#allocation5 + $0x140] sm:$0xff]
    %v181 = vld [vmem:[#allocation5 + $0x148] sm:$0xff]
    %v182 = vld [vmem:[#allocation5 + $0x150] sm:$0xff]
    %v183 = vld [vmem:[#allocation5 + $0x158] sm:$0xff]
    %v184 = vld [vmem:[#allocation5 + $0x160] sm:$0xff]
    %v185 = vld [vmem:[#allocation5 + $0x168] sm:$0xff]
    %v186 = vld [vmem:[#allocation5 + $0x170] sm:$0xff]
    %v187 = vld [vmem:[#allocation5 + $0x178] sm:$0xff]
    %v188 = vld [vmem:[#allocation5 + $0x180] sm:$0xff]
    %v189 = vld [vmem:[#allocation5 + $0x188] sm:$0xff]
    %v190 = vld [vmem:[#allocation5 + $0x190] sm:$0xff]
    %v191 = vld [vmem:[#allocation5 + $0x198] sm:$0xff]
    %v192 = vld [vmem:[#allocation5 + $0x1a0] sm:$0xff]
    %v193 = vld [vmem:[#allocation5 + $0x1a8] sm:$0xff]
    %v194 = vld [vmem:[#allocation5 + $0x1b0] sm:$0xff]
    %v195 = vld [vmem:[#allocation5 + $0x1b8] sm:$0xff]
    %v196 = vld [vmem:[#allocation5 + $0x1c0] sm:$0xff]
    %v197 = vld [vmem:[#allocation5 + $0x1c8] sm:$0xff]
    %v198 = vld [vmem:[#allocation5 + $0x1d0] sm:$0xff]
    %v199 = vld [vmem:[#allocation5 + $0x1d8] sm:$0xff]
    %v200 = vld [vmem:[#allocation5 + $0x1e0] sm:$0xff]
    %v201 = vld [vmem:[#allocation5 + $0x1e8] sm:$0xff]
    %v202 = vld [vmem:[#allocation5 + $0x1f0] sm:$0xff]
    %v203 = vld [vmem:[#allocation5 + $0x1f8] sm:$0xff]
    %v204 = vld [vmem:[#allocation5 + $0x200] sm:$0xff]
    %v205 = vld [vmem:[#allocation5 + $0x208] sm:$0xff]
    %v206 = vld [vmem:[#allocation5 + $0x210] sm:$0xff]
    %v207 = vld [vmem:[#allocation5 + $0x218] sm:$0xff]
    %v208 = vld [vmem:[#allocation5 + $0x220] sm:$0xff]
    %v209 = vld [vmem:[#allocation5 + $0x228] sm:$0xff]
    %v210 = vld [vmem:[#allocation5 + $0x230] sm:$0xff]
    %v211 = vld [vmem:[#allocation5 + $0x238] sm:$0xff]
    %v212 = vld [vmem:[#allocation5 + $0x240] sm:$0xff]
    %v213 = vld [vmem:[#allocation5 + $0x248] sm:$0xff]
    %v214 = vld [vmem:[#allocation5 + $0x250] sm:$0xff]
    %v215 = vld [vmem:[#allocation5 + $0x258] sm:$0xff]
    %v216 = vld [vmem:[#allocation5 + $0x260] sm:$0xff]
    %v217 = vld [vmem:[#allocation5 + $0x268] sm:$0xff]
    %v218 = vld [vmem:[#allocation5 + $0x270] sm:$0xff]
    %v219 = vld [vmem:[#allocation5 + $0x278] sm:$0xff]
    %v220 = vld [vmem:[#allocation5 + $0x280] sm:$0xff]
    %v221 = vld [vmem:[#allocation5 + $0x288] sm:$0xff]
    %v222 = vld [vmem:[#allocation5 + $0x290] sm:$0xff]
    %v223 = vld [vmem:[#allocation5 + $0x298] sm:$0xff]
    %v224 = vld [vmem:[#allocation5 + $0x2a0] sm:$0xff]
    %v225 = vld [vmem:[#allocation5 + $0x2a8] sm:$0xff]
    %v226 = vld [vmem:[#allocation5 + $0x2b0] sm:$0xff]
    %v227 = vld [vmem:[#allocation5 + $0x2b8] sm:$0xff]
    %v228 = vld [vmem:[#allocation5 + $0x2c0] sm:$0xff]
    %v229 = vld [vmem:[#allocation5 + $0x2c8] sm:$0xff]
    %v230 = vld [vmem:[#allocation5 + $0x2d0] sm:$0xff]
    %v231 = vld [vmem:[#allocation5 + $0x2d8] sm:$0xff]
    %v232 = vld [vmem:[#allocation5 + $0x2e0] sm:$0xff]
    %v233 = vld [vmem:[#allocation5 + $0x2e8] sm:$0xff]
    %v234 = vld [vmem:[#allocation5 + $0x2f0] sm:$0xff]
    %v235 = vld [vmem:[#allocation5 + $0x2f8] sm:$0xff]
    %v236 = vsub.f32 %v44, %v140
    %v237 = vsub.f32 %v45, %v141
    %v238 = vsub.f32 %v46, %v142
    %v239 = vsub.f32 %v47, %v143
    %v240 = vsub.f32 %v48, %v144
    %v241 = vsub.f32 %v49, %v145
    %v242 = vsub.f32 %v50, %v146
    %v243 = vsub.f32 %v51, %v147
    %v244 = vsub.f32 %v52, %v148
    %v245 = vsub.f32 %v53, %v149
    %v246 = vsub.f32 %v54, %v150
    %v247 = vsub.f32 %v55, %v151
    %v248 = vsub.f32 %v56, %v152
    %v249 = vsub.f32 %v57, %v153
    %v250 = vsub.f32 %v58, %v154
    %v251 = vsub.f32 %v59, %v155
    %v252 = vsub.f32 %v60, %v156
    %v253 = vsub.f32 %v61, %v157
    %v254 = vsub.f32 %v62, %v158
    %v255 = vsub.f32 %v63, %v159
    %v256 = vsub.f32 %v64, %v160
    %v257 = vsub.f32 %v65, %v161
    %v258 = vsub.f32 %v66, %v162
    %v259 = vsub.f32 %v67, %v163
    %v260 = vsub.f32 %v68, %v164
    %v261 = vsub.f32 %v69, %v165
    %v262 = vsub.f32 %v70, %v166
    %v263 = vsub.f32 %v71, %v167
    %v264 = vsub.f32 %v72, %v168
    %v265 = vsub.f32 %v73, %v169
    %v266 = vsub.f32 %v74, %v170
    %v267 = vsub.f32 %v75, %v171
    %v268 = vsub.f32 %v76, %v172
    %v269 = vsub.f32 %v77, %v173
    %v270 = vsub.f32 %v78, %v174
    %v271 = vsub.f32 %v79, %v175
    %v272 = vsub.f32 %v80, %v176
    %v273 = vsub.f32 %v81, %v177
    %v274 = vsub.f32 %v82, %v178
    %v275 = vsub.f32 %v83, %v179
    %v276 = vsub.f32 %v84, %v180
    %v277 = vsub.f32 %v85, %v181
    %v278 = vsub.f32 %v86, %v182
    %v279 = vsub.f32 %v87, %v183
    %v280 = vsub.f32 %v88, %v184
    %v281 = vsub.f32 %v89, %v185
    %v282 = vsub.f32 %v90, %v186
    %v283 = vsub.f32 %v91, %v187
    %v284 = vsub.f32 %v92, %v188
    %v285 = vsub.f32 %v93, %v189
    %v286 = vsub.f32 %v94, %v190
    %v287 = vsub.f32 %v95, %v191
    %v288 = vsub.f32 %v96, %v192
    %v289 = vsub.f32 %v97, %v193
    %v290 = vsub.f32 %v98, %v194
    %v291 = vsub.f32 %v99, %v195
    %v292 = vsub.f32 %v100, %v196
    %v293 = vsub.f32 %v101, %v197
    %v294 = vsub.f32 %v102, %v198
    %v295 = vsub.f32 %v103, %v199
    %v296 = vsub.f32 %v104, %v200
    %v297 = vsub.f32 %v105, %v201
    %v298 = vsub.f32 %v106, %v202
    %v299 = vsub.f32 %v107, %v203
    %v300 = vsub.f32 %v108, %v204
    %v301 = vsub.f32 %v109, %v205
    %v302 = vsub.f32 %v110, %v206
    %v303 = vsub.f32 %v111, %v207
    %v304 = vsub.f32 %v112, %v208
    %v305 = vsub.f32 %v113, %v209
    %v306 = vsub.f32 %v114, %v210
    %v307 = vsub.f32 %v115, %v211
    %v308 = vsub.f32 %v116, %v212
    %v309 = vsub.f32 %v117, %v213
    %v310 = vsub.f32 %v118, %v214
    %v311 = vsub.f32 %v119, %v215
    %v312 = vsub.f32 %v120, %v216
    %v313 = vsub.f32 %v121, %v217
    %v314 = vsub.f32 %v122, %v218
    %v315 = vsub.f32 %v123, %v219
    %v316 = vsub.f32 %v124, %v220
    %v317 = vsub.f32 %v125, %v221
    %v318 = vsub.f32 %v126, %v222
    %v319 = vsub.f32 %v127, %v223
    %v320 = vsub.f32 %v128, %v224
    %v321 = vsub.f32 %v129, %v225
    %v322 = vsub.f32 %v130, %v226
    %v323 = vsub.f32 %v131, %v227
    %v324 = vsub.f32 %v132, %v228
    %v325 = vsub.f32 %v133, %v229
    %v326 = vsub.f32 %v134, %v230
    %v327 = vsub.f32 %v135, %v231
    %v328 = vsub.f32 %v136, %v232
    %v329 = vsub.f32 %v137, %v233
    %v330 = vsub.f32 %v138, %v234
    %v331 = vsub.f32 %v139, %v235
    %v332 = vand.u32 2147483647, %v236
    %v333 = vand.u32 2147483647, %v237
    %v334 = vand.u32 2147483647, %v238
    %v335 = vand.u32 2147483647, %v239
    %v336 = vand.u32 2147483647, %v240
    %v337 = vand.u32 2147483647, %v241
    %v338 = vand.u32 2147483647, %v242
    %v339 = vand.u32 2147483647, %v243
    %v340 = vand.u32 2147483647, %v244
    %v341 = vand.u32 2147483647, %v245
    %v342 = vand.u32 2147483647, %v246
    %v343 = vand.u32 2147483647, %v247
    %v344 = vand.u32 2147483647, %v248
    %v345 = vand.u32 2147483647, %v249
    %v346 = vand.u32 2147483647, %v250
    %v347 = vand.u32 2147483647, %v251
    %v348 = vand.u32 2147483647, %v252
    %v349 = vand.u32 2147483647, %v253
    %v350 = vand.u32 2147483647, %v254
    %v351 = vand.u32 2147483647, %v255
    %v352 = vand.u32 2147483647, %v256
    %v353 = vand.u32 2147483647, %v257
    %v354 = vand.u32 2147483647, %v258
    %v355 = vand.u32 2147483647, %v259
    %v356 = vand.u32 2147483647, %v260
    %v357 = vand.u32 2147483647, %v261
    %v358 = vand.u32 2147483647, %v262
    %v359 = vand.u32 2147483647, %v263
    %v360 = vand.u32 2147483647, %v264
    %v361 = vand.u32 2147483647, %v265
    %v362 = vand.u32 2147483647, %v266
    %v363 = vand.u32 2147483647, %v267
    %v364 = vand.u32 2147483647, %v268
    %v365 = vand.u32 2147483647, %v269
    %v366 = vand.u32 2147483647, %v270
    %v367 = vand.u32 2147483647, %v271
    %v368 = vand.u32 2147483647, %v272
    %v369 = vand.u32 2147483647, %v273
    %v370 = vand.u32 2147483647, %v274
    %v371 = vand.u32 2147483647, %v275
    %v372 = vand.u32 2147483647, %v276
    %v373 = vand.u32 2147483647, %v277
    %v374 = vand.u32 2147483647, %v278
    %v375 = vand.u32 2147483647, %v279
    %v376 = vand.u32 2147483647, %v280
    %v377 = vand.u32 2147483647, %v281
    %v378 = vand.u32 2147483647, %v282
    %v379 = vand.u32 2147483647, %v283
    %v380 = vand.u32 2147483647, %v284
    %v381 = vand.u32 2147483647, %v285
    %v382 = vand.u32 2147483647, %v286
    %v383 = vand.u32 2147483647, %v287
    %v384 = vand.u32 2147483647, %v288
    %v385 = vand.u32 2147483647, %v289
    %v386 = vand.u32 2147483647, %v290
    %v387 = vand.u32 2147483647, %v291
    %v388 = vand.u32 2147483647, %v292
    %v389 = vand.u32 2147483647, %v293
    %v390 = vand.u32 2147483647, %v294
    %v391 = vand.u32 2147483647, %v295
    %v392 = vand.u32 2147483647, %v296
    %v393 = vand.u32 2147483647, %v297
    %v394 = vand.u32 2147483647, %v298
    %v395 = vand.u32 2147483647, %v299
    %v396 = vand.u32 2147483647, %v300
    %v397 = vand.u32 2147483647, %v301
    %v398 = vand.u32 2147483647, %v302
    %v399 = vand.u32 2147483647, %v303
    %v400 = vand.u32 2147483647, %v304
    %v401 = vand.u32 2147483647, %v305
    %v402 = vand.u32 2147483647, %v306
    %v403 = vand.u32 2147483647, %v307
    %v404 = vand.u32 2147483647, %v308
    %v405 = vand.u32 2147483647, %v309
    %v406 = vand.u32 2147483647, %v310
    %v407 = vand.u32 2147483647, %v311
    %v408 = vand.u32 2147483647, %v312
    %v409 = vand.u32 2147483647, %v313
    %v410 = vand.u32 2147483647, %v314
    %v411 = vand.u32 2147483647, %v315
    %v412 = vand.u32 2147483647, %v316
    %v413 = vand.u32 2147483647, %v317
    %v414 = vand.u32 2147483647, %v318
    %v415 = vand.u32 2147483647, %v319
    %v416 = vand.u32 2147483647, %v320
    %v417 = vand.u32 2147483647, %v321
    %v418 = vand.u32 2147483647, %v322
    %v419 = vand.u32 2147483647, %v323
    %v420 = vand.u32 2147483647, %v324
    %v421 = vand.u32 2147483647, %v325
    %v422 = vand.u32 2147483647, %v326
    %v423 = vand.u32 2147483647, %v327
    %v424 = vand.u32 2147483647, %v328
    %v425 = vand.u32 2147483647, %v329
    %v426 = vand.u32 2147483647, %v330
    %v427 = vand.u32 2147483647, %v331
    %v428 = vadd.f32 %v332, %v364
    %v429 = vadd.f32 %v428, %v396
    %v430 = vadd.f32 %v333, %v365
    %v431 = vadd.f32 %v430, %v397
    %v432 = vadd.f32 %v334, %v366
    %v433 = vadd.f32 %v432, %v398
    %v434 = vadd.f32 %v335, %v367
    %v435 = vadd.f32 %v434, %v399
    %v436 = vadd.f32 %v336, %v368
    %v437 = vadd.f32 %v436, %v400
    %v438 = vadd.f32 %v337, %v369
    %v439 = vadd.f32 %v438, %v401
    %v440 = vadd.f32 %v338, %v370
    %v441 = vadd.f32 %v440, %v402
    %v442 = vadd.f32 %v339, %v371
    %v443 = vadd.f32 %v442, %v403
    %v444 = vadd.f32 %v340, %v372
    %v445 = vadd.f32 %v444, %v404
    %v446 = vadd.f32 %v341, %v373
    %v447 = vadd.f32 %v446, %v405
    %v448 = vadd.f32 %v342, %v374
    %v449 = vadd.f32 %v448, %v406
    %v450 = vadd.f32 %v343, %v375
    %v451 = vadd.f32 %v450, %v407
    %v452 = vadd.f32 %v344, %v376
    %v453 = vadd.f32 %v452, %v408
    %v454 = vadd.f32 %v345, %v377
    %v455 = vadd.f32 %v454, %v409
    %v456 = vadd.f32 %v346, %v378
    %v457 = vadd.f32 %v456, %v410
    %v458 = vadd.f32 %v347, %v379
    %v459 = vadd.f32 %v458, %v411
    %v460 = vadd.f32 %v348, %v380
    %v461 = vadd.f32 %v460, %v412
    %v462 = vadd.f32 %v349, %v381
    %v463 = vadd.f32 %v462, %v413
    %v464 = vadd.f32 %v350, %v382
    %v465 = vadd.f32 %v464, %v414
    %v466 = vadd.f32 %v351, %v383
    %v467 = vadd.f32 %v466, %v415
    %v468 = vadd.f32 %v352, %v384
    %v469 = vadd.f32 %v468, %v416
    %v470 = vadd.f32 %v353, %v385
    %v471 = vadd.f32 %v470, %v417
    %v472 = vadd.f32 %v354, %v386
    %v473 = vadd.f32 %v472, %v418
    %v474 = vadd.f32 %v355, %v387
    %v475 = vadd.f32 %v474, %v419
    %v476 = vadd.f32 %v356, %v388
    %v477 = vadd.f32 %v476, %v420
    %v478 = vadd.f32 %v357, %v389
    %v479 = vadd.f32 %v478, %v421
    %v480 = vadd.f32 %v358, %v390
    %v481 = vadd.f32 %v480, %v422
    %v482 = vadd.f32 %v359, %v391
    %v483 = vadd.f32 %v482, %v423
    %v484 = vadd.f32 %v360, %v392
    %v485 = vadd.f32 %v484, %v424
    %v486 = vadd.f32 %v361, %v393
    %v487 = vadd.f32 %v486, %v425
    %v488 = vadd.f32 %v362, %v394
    %v489 = vadd.f32 %v488, %v426
    %v490 = vadd.f32 %v363, %v395
    %v491 = vadd.f32 %v490, %v427
    %492 = vst [vmem:[#allocation7] sm:$0xff] %v429
    %493 = vst [vmem:[#allocation7 + $0x8] sm:$0xff] %v431
    %494 = vst [vmem:[#allocation7 + $0x10] sm:$0xff] %v433
    %495 = vst [vmem:[#allocation7 + $0x18] sm:$0xff] %v435
    %496 = vst [vmem:[#allocation7 + $0x20] sm:$0xff] %v437
    %497 = vst [vmem:[#allocation7 + $0x28] sm:$0xff] %v439
    %498 = vst [vmem:[#allocation7 + $0x30] sm:$0xff] %v441
    %499 = vst [vmem:[#allocation7 + $0x38] sm:$0xff] %v443
    %500 = vst [vmem:[#allocation7 + $0x40] sm:$0xff] %v445
    %501 = vst [vmem:[#allocation7 + $0x48] sm:$0xff] %v447
    %502 = vst [vmem:[#allocation7 + $0x50] sm:$0xff] %v449
    %503 = vst [vmem:[#allocation7 + $0x58] sm:$0xff] %v451
    %504 = vst [vmem:[#allocation7 + $0x60] sm:$0xff] %v453
    %505 = vst [vmem:[#allocation7 + $0x68] sm:$0xff] %v455
    %506 = vst [vmem:[#allocation7 + $0x70] sm:$0xff] %v457
    %507 = vst [vmem:[#allocation7 + $0x78] sm:$0xff] %v459
    %508 = vst [vmem:[#allocation7 + $0x80] sm:$0xff] %v461
    %509 = vst [vmem:[#allocation7 + $0x88] sm:$0xff] %v463
    %510 = vst [vmem:[#allocation7 + $0x90] sm:$0xff] %v465
    %511 = vst [vmem:[#allocation7 + $0x98] sm:$0xff] %v467
    %512 = vst [vmem:[#allocation7 + $0xa0] sm:$0xff] %v469
    %513 = vst [vmem:[#allocation7 + $0xa8] sm:$0xff] %v471
    %514 = vst [vmem:[#allocation7 + $0xb0] sm:$0xff] %v473
    %515 = vst [vmem:[#allocation7 + $0xb8] sm:$0xff] %v475
    %516 = vst [vmem:[#allocation7 + $0xc0] sm:$0xff] %v477
    %517 = vst [vmem:[#allocation7 + $0xc8] sm:$0xff] %v479
    %518 = vst [vmem:[#allocation7 + $0xd0] sm:$0xff] %v481
    %519 = vst [vmem:[#allocation7 + $0xd8] sm:$0xff] %v483
    %520 = vst [vmem:[#allocation7 + $0xe0] sm:$0xff] %v485
    %521 = vst [vmem:[#allocation7 + $0xe8] sm:$0xff] %v487
    %522 = vst [vmem:[#allocation7 + $0xf0] sm:$0xff] %v489
    %523 = vst [vmem:[#allocation7 + $0xf8] sm:$0xff] %v491
    // Predicated region
    $region18: #{tpu_custom_call.1} parent=1 // pred_check
      _
    $region19: #{tpu_custom_call.1} parent=1 // pred_check_branch
      %525 = sbr.rel (0) target = $region21
    $region20: #{tpu_custom_call.1} parent=1 // pred_region
      %527 = vsyncadd [#allocation4], 0
      %s529 = sshll.u32 [#allocation7], 4
      %s530 = int_to_ptr.vmem [resolvable:$true] %s529
      %s531 = sshll.u32 %s2, 4
      %s532 = int_to_ptr.hbm [resolvable:$true] %s531
      %534 = dma.vmem_to_hbm [thread:$0]  %s530, 4096, %s532, [#allocation4]
    $region21: #{tpu_custom_call.1} parent=1 // pred_fallthru
      _
    // Predicated region
    $region22: #{tpu_custom_call.1} parent=1 // pred_check
      _
    $region23: #{tpu_custom_call.1} parent=1 // pred_check_branch
      %536 = sbr.rel (0) target = $region25
    $region24: #{tpu_custom_call.1} parent=1 // pred_region
      %538 = dma.done [#allocation4], 4096
    $region25: #{tpu_custom_call.1} parent=1 // pred_fallthru
      _
    %539 = vsyncpa [#allocation3], 1
    %540 = vsyncpa [#allocation6], 1
    %541 = vsyncpa [#allocation4], 1

</llo_original>
